<compile_context>
chip_gen: v5e
topology: v5e:2x2
jax: 0.10.0
libtpu: 0.0.40
codegen_flags: <defaults>
</compile_context>

<pallas_src>
import functools

import jax
import jax.numpy as jnp
from jax.experimental import pallas as pl
from jax.experimental.pallas import tpu as pltpu


def _round_up(x, m):
    return (x + m - 1) // m * m


def _vmem_capacity_bytes():
    try:
        return int(pltpu.get_tpu_info().vmem_capacity_bytes)
    except Exception:
        return 64 << 20  # conservative fallback (v7x per-TC VMEM)


def _batch_tile_cap():
    # 256 fills the 2x256^2 MXU on v6e / v7x; keep 128 on v4/v5-class chips
    # (128-wide MXU) where the larger tile only adds restream pressure.
    try:
        kind = jax.devices()[0].device_kind.lower()
        if "v4" in kind or "v5" in kind:
            return 128
    except Exception:
        pass
    return 256


# ----------------------------------------------------------------------------
# Kernel: one (tm, tn) output tile = text_tile @ W_txt_tile
#                                   + image_tile @ W_img_tile + bias[cols].
# K (= embed_dim) is carried whole -> no reduction axis, no accumulator.
# Bias is a single resident (1, d_pad) block; the tn-wide chunk is sliced
# in-kernel (col_axis tells which grid axis indexes output columns).
# ----------------------------------------------------------------------------
def weighted_attention_kernel(text_ref, image_ref, w_txt_ref, w_img_ref, b_ref,
                              out_ref, *, col_axis, tn):
    acc = jnp.dot(text_ref[...], w_txt_ref[...], preferred_element_type=jnp.float32)
    acc = acc + jnp.dot(image_ref[...], w_img_ref[...], preferred_element_type=jnp.float32)
    col = pl.multiple_of(pl.program_id(col_axis) * tn, 128)
    acc = acc + b_ref[:, pl.ds(col, tn)].astype(jnp.float32)   # (1, tn) broadcasts over rows
    out_ref[...] = acc.astype(out_ref.dtype)


# ----------------------------------------------------------------------------
# One-time parameter preparation (model init, NOT per forward):
#   * transpose PyTorch-layout (D, 2D) weight to (2D, D)
#   * split into text / image halves
#   * zero-pad output columns + bias to a lane-dense multiple of 128
#   * optionally cast weights to bf16 (recommended on v6e / v7x: halves the
#     dominant weight HBM stream; accumulation stays f32 in the kernel)
# ----------------------------------------------------------------------------
def prepare_weighted_attention_params(weight, bias, *, param_dtype=None):
    D, D2 = weight.shape
    assert D2 == 2 * D, "expected PyTorch nn.Linear(2*D, D) weight of shape (D, 2*D)"
    d_pad = _round_up(D, 128)

    w_t = weight.T                       # (2D, D)
    w_txt = w_t[:D, :]                   # (D, D)  multiplies text half
    w_img = w_t[D:, :]                   # (D, D)  multiplies image half

    pad = d_pad - D
    if pad:
        w_txt = jnp.pad(w_txt, ((0, 0), (0, pad)))
        w_img = jnp.pad(w_img, ((0, 0), (0, pad)))
        bias = jnp.pad(bias, (0, pad))
    if param_dtype is not None:
        w_txt = w_txt.astype(param_dtype)
        w_img = w_img.astype(param_dtype)
    b2d = bias.reshape(1, d_pad).astype(jnp.float32)
    return w_txt, w_img, b2d, D          # D = true (unpadded) output dim


def _choose_tiles(B, D, d_pad, act_b, w_b, out_b, vmem_budget, tm_cap):
    tm = tm_cap if B >= tm_cap else _round_up(B, 8)

    def est(tm_, tn_):
        return (2 * (2 * tm_ * D * act_b          # text + image tiles (double-buffered)
                     + 2 * D * tn_ * w_b          # two weight half tiles
                     + tm_ * tn_ * out_b)         # output tile
                + 2 * d_pad * 4)                  # resident bias

    tn_opts = [t for t in (1024, 512, 256, 128) if d_pad % t == 0] or [d_pad]
    tn = tn_opts[-1]
    for cand in tn_opts:
        if est(tm, cand) <= vmem_budget:
            tn = cand
            break
    while tm > 8 and est(tm, tn) > vmem_budget:
        tm = max(8, ((tm // 2) // 8) * 8)
    return tm, tn, est(tm, tn)


# ----------------------------------------------------------------------------
# Forward: text_emb, image_emb are (B, D); params come from prepare_*_params.
# ----------------------------------------------------------------------------
def weighted_attention(text_emb, image_emb, w_txt, w_img, b2d, out_dim):
    B, D = text_emb.shape
    assert w_txt.shape[0] == D and image_emb.shape == (B, D)
    d_pad = w_txt.shape[1]
    out_dtype = text_emb.dtype

    # If bf16 (or other) weights were prepared, cast activations ONCE here so
    # the kernel never re-casts on revisited blocks (and the activation HBM
    # stream shrinks too).  No-op for the f32 path.
    if text_emb.dtype != w_txt.dtype:
        text_emb = text_emb.astype(w_txt.dtype)
        image_emb = image_emb.astype(w_txt.dtype)

    act_b = text_emb.dtype.itemsize
    w_b = w_txt.dtype.itemsize
    out_b = jnp.dtype(out_dtype).itemsize

    vmem_cap = _vmem_capacity_bytes()
    tm, tn, est_vmem = _choose_tiles(B, D, d_pad, act_b, w_b, out_b,
                                     int(0.75 * vmem_cap), _batch_tile_cap())
    if est_vmem > 0.85 * vmem_cap:
        # TODO(synk): add an innermost "arbitrary" K-reduction grid axis with an
        # f32 VMEM accumulator for very large embed_dim instead of failing here.
        raise ValueError(f"embed_dim={D} too large for the no-K-tiling path on this chip")

    b_pad = _round_up(B, tm)
    if b_pad != B:
        text_emb = jnp.pad(text_emb, ((0, b_pad - B), (0, 0)))
        image_emb = jnp.pad(image_emb, ((0, b_pad - B), (0, 0)))

    b_tiles = b_pad // tm
    n_tiles = d_pad // tn

    # Grid-order selection by restream cost (the inner axis re-streams whatever
    # the outer-axis-keyed operand is NOT):
    #   batch-outer  -> full weight re-streamed per batch tile
    #   column-outer -> activations re-streamed per column tile, weight fetched once
    weight_restream = (b_tiles - 1) * 2 * D * d_pad * w_b
    act_restream = (n_tiles - 1) * 2 * b_pad * D * act_b
    col_outer = act_restream <= weight_restream

    if col_outer:
        grid = (n_tiles, b_tiles)
        col_axis = 0
        act_map = lambda j, i: (i, 0)
        w_map = lambda j, i: (0, j)
        out_map = lambda j, i: (i, j)
    else:
        grid = (b_tiles, n_tiles)
        col_axis = 1
        act_map = lambda i, j: (i, 0)
        w_map = lambda i, j: (0, j)
        out_map = lambda i, j: (i, j)
    bias_map = lambda *_: (0, 0)        # resident: fetched once

    vmem_limit = int(min(max(est_vmem + (4 << 20), 32 << 20), 0.9 * vmem_cap))

    kernel = functools.partial(weighted_attention_kernel, col_axis=col_axis, tn=tn)

    out = pl.pallas_call(
        kernel,
        out_shape=jax.ShapeDtypeStruct((b_pad, d_pad), out_dtype),
        grid_spec=pltpu.PrefetchScalarGridSpec(
            num_scalar_prefetch=0,
            grid=grid,
            in_specs=[
                pl.BlockSpec((tm, D), act_map),       # text tile
                pl.BlockSpec((tm, D), act_map),       # image tile
                pl.BlockSpec((D, tn), w_map),         # W_txt tile (keyed on column axis only)
                pl.BlockSpec((D, tn), w_map),         # W_img tile
                pl.BlockSpec((1, d_pad), bias_map),   # full bias, resident
            ],
            out_specs=pl.BlockSpec((tm, tn), out_map),
        ),
        compiler_params=pltpu.CompilerParams(
            dimension_semantics=("parallel", "parallel"),
            vmem_limit_bytes=vmem_limit,
        ),
    )(text_emb, image_emb, w_txt, w_img, b2d)

    # Strip batch / lane padding (no-op slices when already aligned).
    return out[:B, :out_dim]


def reference(text_emb, image_emb, weight, bias):
    combined = jnp.concatenate([text_emb, image_emb], axis=1)
    return combined @ weight.T + bias


if __name__ == "__main__":
    B, D = 8, 32
    key = jax.random.PRNGKey(0)
    k_t, k_i, k_w, k_b = jax.random.split(key, 4)

    text_emb = jax.random.normal(k_t, (B, D), dtype=jnp.float32)
    image_emb = jax.random.normal(k_i, (B, D), dtype=jnp.float32)

    # Deterministic nn.Linear-style init: U(-1/sqrt(in_features), 1/sqrt(in_features))
    bound = 1.0 / jnp.sqrt(jnp.float32(2 * D))
    weight = jax.random.uniform(k_w, (D, 2 * D), minval=-bound, maxval=bound, dtype=jnp.float32)
    bias = jax.random.uniform(k_b, (D,), minval=-bound, maxval=bound, dtype=jnp.float32)

    # One-time prep (model init).  On v6e/v7x pass param_dtype=jnp.bfloat16 for
    # the bf16 MXU / halved weight-stream path (loosen allclose accordingly).
    w_txt, w_img, b2d, out_dim = prepare_weighted_attention_params(weight, bias)

    out = weighted_attention(text_emb, image_emb, w_txt, w_img, b2d, out_dim)
    out = jax.block_until_ready(out)

    ref = reference(text_emb, image_emb, weight, bias)
    assert out.shape == (B, D)
    assert jnp.allclose(out, ref, atol=1e-5, rtol=1e-5), "mismatch vs reference"

    print("KERNEL_OK")
</pallas_src>

<mosaic_0001>
module attributes {stable_mosaic.version = 11 : i64} {
  func.func @weighted_attention_kernel(%arg0: i32, %arg1: i32, %arg2: memref<8x32xf32, #tpu.memory_space<vmem>>, %arg3: memref<8x32xf32, #tpu.memory_space<vmem>>, %arg4: memref<32x128xf32, #tpu.memory_space<vmem>>, %arg5: memref<32x128xf32, #tpu.memory_space<vmem>>, %arg6: memref<1x128xf32, #tpu.memory_space<vmem>>, %arg7: memref<8x128xf32, #tpu.memory_space<vmem>>) attributes {dimension_semantics = [#tpu.dimension_semantics<parallel>, #tpu.dimension_semantics<parallel>], iteration_bounds = array<i64: 1, 1>, scalar_prefetch = 0 : i64, scratch_operands = 0 : i64, tpu.core_type = #tpu.core_type<tc>, window_params = [{transform_indices = @transform_0, window_bounds = array<i64: 8, 32>}, {transform_indices = @transform_1, window_bounds = array<i64: 8, 32>}, {transform_indices = @transform_2, window_bounds = array<i64: 32, 128>}, {transform_indices = @transform_3, window_bounds = array<i64: 32, 128>}, {pipeline_mode = #tpu.pipeline_mode<synchronous>, transform_indices = @transform_4, window_bounds = array<i64: 1, 128>}, {transform_indices = @transform_5, window_bounds = array<i64: 8, 128>}]} {
    %c0 = arith.constant 0 : index
    %c0_0 = arith.constant 0 : index
    %0 = vector.load %arg2[%c0, %c0_0] : memref<8x32xf32, #tpu.memory_space<vmem>>, vector<8x32xf32>
    %c0_1 = arith.constant 0 : index
    %c0_2 = arith.constant 0 : index
    %1 = vector.load %arg4[%c0_1, %c0_2] : memref<32x128xf32, #tpu.memory_space<vmem>>, vector<32x128xf32>
    %cst = arith.constant dense<0.000000e+00> : vector<8x128xf32>
    %2 = tpu.matmul %0, %1, %cst {dimension_numbers = #tpu.dot_dimension_numbers<[1], [0], [0], [1], [0, 0, 1, 1], [], []>} : vector<8x32xf32>, vector<32x128xf32>, vector<8x128xf32> -> vector<8x128xf32>
    %c0_3 = arith.constant 0 : index
    %c0_4 = arith.constant 0 : index
    %3 = vector.load %arg3[%c0_3, %c0_4] : memref<8x32xf32, #tpu.memory_space<vmem>>, vector<8x32xf32>
    %c0_5 = arith.constant 0 : index
    %c0_6 = arith.constant 0 : index
    %4 = vector.load %arg5[%c0_5, %c0_6] : memref<32x128xf32, #tpu.memory_space<vmem>>, vector<32x128xf32>
    %cst_7 = arith.constant dense<0.000000e+00> : vector<8x128xf32>
    %5 = tpu.matmul %3, %4, %cst_7 {dimension_numbers = #tpu.dot_dimension_numbers<[1], [0], [0], [1], [0, 0, 1, 1], [], []>} : vector<8x32xf32>, vector<32x128xf32>, vector<8x128xf32> -> vector<8x128xf32>
    %6 = arith.addf %2, %5 : vector<8x128xf32>
    %c128_i32 = arith.constant 128 : i32
    %7 = arith.muli %arg0, %c128_i32 : i32
    %8 = tpu.assume_multiple %7, 128 : i32
    %c0_8 = arith.constant 0 : index
    %9 = arith.index_cast %8 : i32 to index
    %10 = vector.load %arg6[%c0_8, %9] : memref<1x128xf32, #tpu.memory_space<vmem>>, vector<1x128xf32>
    %11 = vector.broadcast %10 : vector<1x128xf32> to vector<8x128xf32>
    %12 = arith.addf %6, %11 : vector<8x128xf32>
    %c0_9 = arith.constant 0 : index
    %c0_10 = arith.constant 0 : index
    %13 = vector.load %arg7[%c0_9, %c0_10] : memref<8x128xf32, #tpu.memory_space<vmem>>, vector<8x128xf32>
    tpu.vector_store %arg7[%c0_9, %c0_10], %12 {strides = array<i32>} : memref<8x128xf32, #tpu.memory_space<vmem>>, vector<8x128xf32>,
    return
  }
  func.func @transform_0(%arg0: i32, %arg1: i32) -> (i32, i32) {
    %c0_i32 = arith.constant 0 : i32
    %c0_i32_0 = arith.constant 0 : i32
    return %arg1, %c0_i32 : i32, i32
  }
  func.func @transform_1(%arg0: i32, %arg1: i32) -> (i32, i32) {
    %c0_i32 = arith.constant 0 : i32
    %c0_i32_0 = arith.constant 0 : i32
    return %arg1, %c0_i32 : i32, i32
  }
  func.func @transform_2(%arg0: i32, %arg1: i32) -> (i32, i32) {
    %c0_i32 = arith.constant 0 : i32
    %c0_i32_0 = arith.constant 0 : i32
    return %c0_i32, %arg0 : i32, i32
  }
  func.func @transform_3(%arg0: i32, %arg1: i32) -> (i32, i32) {
    %c0_i32 = arith.constant 0 : i32
    %c0_i32_0 = arith.constant 0 : i32
    return %c0_i32, %arg0 : i32, i32
  }
  func.func @transform_4(%arg0: i32, %arg1: i32) -> (i32, i32) {
    %c0_i32 = arith.constant 0 : i32
    %c0_i32_0 = arith.constant 0 : i32
    %c0_i32_1 = arith.constant 0 : i32
    return %c0_i32, %c0_i32_0 : i32, i32
  }
  func.func @transform_5(%arg0: i32, %arg1: i32) -> (i32, i32) {
    %c0_i32 = arith.constant 0 : i32
    return %arg1, %arg0 : i32, i32
  }
}

</mosaic_0001>

<llo_original>
// kernel: tpu_custom_call.1
$region0: #{tpu_custom_call.1}
  #allocation0 [shape = 'u32[]', space=smem, size = 0x4, offset = 0x4, fixed_abs, tag = 'smem constant byte address 0x4 - core index']
  #allocation1 [shape = 'u32[72,128]{1,0:T(1,128)}', space=vmem, size = 0x9000, scoped, tag = 'internal scratch']
  %s0 = inlined_call_operand.hbm [shape: f32[8,32], index: 0, kind: input, shape index: {}]
  %s1 = inlined_call_operand.hbm [shape: f32[8,32], index: 1, kind: input, shape index: {}]
  %s2 = inlined_call_operand.hbm [shape: f32[32,128], index: 2, kind: input, shape index: {}]
  %s3 = inlined_call_operand.hbm [shape: f32[32,128], index: 3, kind: input, shape index: {}]
  %s4 = inlined_call_operand.vmem [shape: f32[1,128], index: 4, kind: input, shape index: {}]
  %s5 = inlined_call_operand.hbm [shape: f32[8,128], index: 5, kind: output, shape index: {}]
  %s6 = sld [smem:[#allocation0]]
  $region46: #{tpu_custom_call.1} parent=0
    _
  %s8 = ssub.s32 1, %s6
  %s9 = scalar_select 0, %s8, %s6
  $region1: #{tpu_custom_call.1} parent=0
    #allocation2 [shape = 'u8[4096]{0}', space=vmem, size = 0x1000, scoped, tag = 'input window, operand 0, single buffered']
    #allocation3 [shape = 's32[1]{0}', space=sflag, size = 0x4, scoped, tag = 'scoped memory for tpu_custom_call.1']
    #allocation4 [shape = 's32[1]{0}', space=sflag, size = 0x4, scoped, tag = 'scoped memory for tpu_custom_call.1']
    #allocation5 [shape = 'u8[4096]{0}', space=vmem, size = 0x1000, scoped, tag = 'input window, operand 1, single buffered']
    #allocation6 [shape = 's32[1]{0}', space=sflag, size = 0x4, scoped, tag = 'scoped memory for tpu_custom_call.1']
    #allocation7 [shape = 'u8[16384]{0}', space=vmem, size = 0x4000, scoped, tag = 'input window, operand 2, single buffered']
    #allocation8 [shape = 'u8[16384]{0}', space=vmem, size = 0x4000, scoped, tag = 'input window, operand 3, single buffered']
    #allocation9 [shape = 's32[1]{0}', space=sflag, size = 0x4, scoped, tag = 'scoped memory for tpu_custom_call.1']
    #allocation10 [shape = 'u8[4096]{0}', space=vmem, size = 0x1000, scoped, tag = 'output window, operand 0, single buffered']
    %10 = vsyncpa [#allocation3], 0
    %11 = vsyncpa [#allocation6], 0
    %12 = vsyncpa [#allocation9], 0
    %13 = vsyncpa [#allocation4], 0
    // Predicated region
    $region2: #{tpu_custom_call.1} parent=1 // pred_check
      _
    $region3: #{tpu_custom_call.1} parent=1 // pred_check_branch
      %15 = sbr.rel (0) target = $region5
    $region4: #{tpu_custom_call.1} parent=1 // pred_region
      %17 = vsyncadd [#allocation3], 0
      %s19 = sshll.u32 %s0, 4
      %s20 = int_to_ptr.hbm [resolvable:$true] %s19
      %s21 = sshll.u32 [#allocation2], 4
      %s22 = int_to_ptr.vmem [resolvable:$true] %s21
      %24 = dma.hbm_to_vmem [thread:$0]  %s20, 128, %s22, [#allocation3]
    $region5: #{tpu_custom_call.1} parent=1 // pred_fallthru
      _
    // Predicated region
    $region6: #{tpu_custom_call.1} parent=1 // pred_check
      _
    $region7: #{tpu_custom_call.1} parent=1 // pred_check_branch
      %26 = sbr.rel (0) target = $region9
    $region8: #{tpu_custom_call.1} parent=1 // pred_region
      %28 = vsyncadd [#allocation6], 0
      %s30 = sshll.u32 %s1, 4
      %s31 = int_to_ptr.hbm [resolvable:$true] %s30
      %s32 = sshll.u32 [#allocation5], 4
      %s33 = int_to_ptr.vmem [resolvable:$true] %s32
      %35 = dma.hbm_to_vmem [thread:$0]  %s31, 128, %s33, [#allocation6]
    $region9: #{tpu_custom_call.1} parent=1 // pred_fallthru
      _
    // Predicated region
    $region10: #{tpu_custom_call.1} parent=1 // pred_check
      _
    $region11: #{tpu_custom_call.1} parent=1 // pred_check_branch
      %37 = sbr.rel (0) target = $region13
    $region12: #{tpu_custom_call.1} parent=1 // pred_region
      %39 = vsyncadd [#allocation6], 0
      %s40 = sshll.u32 %s2, 4
      %s41 = int_to_ptr.hbm [resolvable:$true] %s40
      %s42 = sshll.u32 [#allocation7], 4
      %s43 = int_to_ptr.vmem [resolvable:$true] %s42
      %48 = dma.hbm_to_vmem [thread:$0]  %s41, 512, %s43, [#allocation6], 128, 128, 8
    $region13: #{tpu_custom_call.1} parent=1 // pred_fallthru
      _
    // Predicated region
    $region14: #{tpu_custom_call.1} parent=1 // pred_check
      _
    $region15: #{tpu_custom_call.1} parent=1 // pred_check_branch
      %50 = sbr.rel (0) target = $region17
    $region16: #{tpu_custom_call.1} parent=1 // pred_region
      %52 = vsyncadd [#allocation9], 0
      %s53 = sshll.u32 %s3, 4
      %s54 = int_to_ptr.hbm [resolvable:$true] %s53
      %s55 = sshll.u32 [#allocation8], 4
      %s56 = int_to_ptr.vmem [resolvable:$true] %s55
      %61 = dma.hbm_to_vmem [thread:$0]  %s54, 512, %s56, [#allocation9], 128, 128, 8
    $region17: #{tpu_custom_call.1} parent=1 // pred_fallthru
      _
    // Predicated region
    $region18: #{tpu_custom_call.1} parent=1 // pred_check
      _
    $region19: #{tpu_custom_call.1} parent=1 // pred_check_branch
      %63 = sbr.rel (0) target = $region21
    $region20: #{tpu_custom_call.1} parent=1 // pred_region
      _
    $region21: #{tpu_custom_call.1} parent=1 // pred_fallthru
      _
    // Predicated region
    $region22: #{tpu_custom_call.1} parent=1 // pred_check
      _
    $region23: #{tpu_custom_call.1} parent=1 // pred_check_branch
      %65 = sbr.rel (0) target = $region25
    $region24: #{tpu_custom_call.1} parent=1 // pred_region
      %67 = dma.done [#allocation3], 128
    $region25: #{tpu_custom_call.1} parent=1 // pred_fallthru
      _
    // Predicated region
    $region26: #{tpu_custom_call.1} parent=1 // pred_check
      _
    $region27: #{tpu_custom_call.1} parent=1 // pred_check_branch
      %69 = sbr.rel (0) target = $region29
    $region28: #{tpu_custom_call.1} parent=1 // pred_region
      %71 = dma.done [#allocation6], 128
    $region29: #{tpu_custom_call.1} parent=1 // pred_fallthru
      _
    // Predicated region
    $region30: #{tpu_custom_call.1} parent=1 // pred_check
      _
    $region31: #{tpu_custom_call.1} parent=1 // pred_check_branch
      %73 = sbr.rel (0) target = $region33
    $region32: #{tpu_custom_call.1} parent=1 // pred_region
      %75 = dma.done [#allocation6], 512
    $region33: #{tpu_custom_call.1} parent=1 // pred_fallthru
      _
    // Predicated region
    $region34: #{tpu_custom_call.1} parent=1 // pred_check
      _
    $region35: #{tpu_custom_call.1} parent=1 // pred_check_branch
      %77 = sbr.rel (0) target = $region37
    $region36: #{tpu_custom_call.1} parent=1 // pred_region
      %79 = dma.done [#allocation9], 512
    $region37: #{tpu_custom_call.1} parent=1 // pred_fallthru
      _
    %v80 = vld [vmem:[#allocation2] sm:$0xff]
    %v81 = vld [vmem:[#allocation7] sm:$0xff]
    %v82 = vld [vmem:[#allocation7 + $0x8] sm:$0xff]
    %v83 = vld [vmem:[#allocation7 + $0x10] sm:$0xff]
    %v84 = vld [vmem:[#allocation7 + $0x18] sm:$0xff]
    %v85 = vld [vmem:[#allocation5] sm:$0xff]
    %v86 = vld [vmem:[#allocation8] sm:$0xff]
    %v87 = vld [vmem:[#allocation8 + $0x8] sm:$0xff]
    %v88 = vld [vmem:[#allocation8 + $0x10] sm:$0xff]
    %v89 = vld [vmem:[#allocation8 + $0x18] sm:$0xff]
    %vm90 = vcmask 261120
    %v92 = vsel %vm90, %v85, 0
    %94 = vmatpush.msra.mxu0 0.0
    %95 = vmatpush.msra.mxu0 0.0
    %96 = vmatpush.msra.mxu0 0.0
    %97 = vmatpush.msra.mxu0 0.0
    %98 = vmatpush.msra.mxu0 0.0
    %99 = vmatpush.msra.mxu0 0.0
    %100 = vmatpush.msra.mxu0 0.0
    %101 = vmatpush.msra.mxu0 0.0
    %102 = vmatpush.msra.mxu0 0.0
    %103 = vmatpush.msra.mxu0 0.0
    %104 = vmatpush.msra.mxu0 0.0
    %105 = vmatpush.msra.mxu0 0.0
    %106 = vmatpush.msra.mxu0 %v89
    %107 = vmatpush.msra.mxu0 %v88
    %108 = vmatpush.msra.mxu0 %v87
    %109 = vmatpush.msra.mxu0 %v86
    %110 = vmatmul.f32.gmra.mxu0 %v92
    %v111 = vpop.f32.mrf.mxu0
    %v112 = vadd.f32 0.0, %v111
    %113 = vdwg.mxu0
    %v115 = vsel %vm90, %v80, 0
    %117 = vmatpush.msra.mxu0 0.0
    %118 = vmatpush.msra.mxu0 0.0
    %119 = vmatpush.msra.mxu0 0.0
    %120 = vmatpush.msra.mxu0 0.0
    %121 = vmatpush.msra.mxu0 0.0
    %122 = vmatpush.msra.mxu0 0.0
    %123 = vmatpush.msra.mxu0 0.0
    %124 = vmatpush.msra.mxu0 0.0
    %125 = vmatpush.msra.mxu0 0.0
    %126 = vmatpush.msra.mxu0 0.0
    %127 = vmatpush.msra.mxu0 0.0
    %128 = vmatpush.msra.mxu0 0.0
    %129 = vmatpush.msra.mxu0 %v84
    %130 = vmatpush.msra.mxu0 %v83
    %131 = vmatpush.msra.mxu0 %v82
    %132 = vmatpush.msra.mxu0 %v81
    %133 = vmatmul.f32.gmra.mxu0 %v115
    %v134 = vpop.f32.mrf.mxu0
    %v135 = vadd.f32 %v112, %v134
    %136 = vdwg.mxu0
    %s137 = smul.u32 0, 128
    %s138 = sshra.s32 %s137, 7
    %s139 = sand.u32 %s137, 127
    %s140 = scalar_lea.vmem %s4, %s138
    %v141 = vld [vmem:[%s140] sm:$0x1]
    %v143 = vperm.slane %v141, 0
    %v145 = vadd.f32 %v135, %v143
    %146 = vst [vmem:[#allocation10] sm:$0xff] %v145
    // Predicated region
    $region38: #{tpu_custom_call.1} parent=1 // pred_check
      _
    $region39: #{tpu_custom_call.1} parent=1 // pred_check_branch
      %148 = sbr.rel (0) target = $region41
    $region40: #{tpu_custom_call.1} parent=1 // pred_region
      %150 = vsyncadd [#allocation4], 0
      %s152 = sshll.u32 [#allocation10], 4
      %s153 = int_to_ptr.vmem [resolvable:$true] %s152
      %s154 = sshll.u32 %s5, 4
      %s155 = int_to_ptr.hbm [resolvable:$true] %s154
      %157 = dma.vmem_to_hbm [thread:$0]  %s153, 128, %s155, [#allocation4]
    $region41: #{tpu_custom_call.1} parent=1 // pred_fallthru
      _
    // Predicated region
    $region42: #{tpu_custom_call.1} parent=1 // pred_check
      _
    $region43: #{tpu_custom_call.1} parent=1 // pred_check_branch
      %159 = sbr.rel (0) target = $region45
    $region44: #{tpu_custom_call.1} parent=1 // pred_region
      %161 = dma.done [#allocation4], 128
    $region45: #{tpu_custom_call.1} parent=1 // pred_fallthru
      _
    %162 = vsyncpa [#allocation3], 1
    %163 = vsyncpa [#allocation6], 1
    %164 = vsyncpa [#allocation9], 1
    %165 = vsyncpa [#allocation4], 1

</llo_original>
